<compile_context>
chip_gen: v5e
topology: v5e:2x2
jax: 0.10.0
libtpu: 0.0.40
codegen_flags: <defaults>
</compile_context>

<pallas_src>
import jax
import jax.numpy as jnp
from jax.experimental import pallas as pl
from jax.experimental.pallas import tpu as pltpu


def _round_up(v, m):
    return ((v + m - 1) // m) * m


def _ensemble_kernel(w_ref, b_ref, x_ref, o_ref):
    """Fused (convA + convB) 1x1 head + channel softmax.

    w_ref : SMEM (Cin*Cout,) f32  fused weight, row-major [cin * Cout + cout]
    b_ref : SMEM (Cout,)     f32  fused bias
    x_ref : VMEM (1, Cin,  THW) f32
    o_ref : VMEM (1, Cout, THW) f32
    """
    cin = x_ref.shape[1]
    cout = o_ref.shape[1]

    # Channel rows as lane-dense (1, THW) slabs.
    xr = [x_ref[:, ci, :] for ci in range(cin)]

    # 1x1 conv as VPU FMAs with SMEM-scalar weights (a 4x4 contraction does not
    # belong on the MXU).
    s = []
    for d in range(cout):
        acc = xr[0] * w_ref[0 * cout + d] + b_ref[d]
        for ci in range(1, cin):
            acc = acc + xr[ci] * w_ref[ci * cout + d]
        s.append(acc)

    # Softmax across the channel slabs (== softmax over dim=1 of NCHW).
    m = s[0]
    for d in range(1, cout):
        m = jnp.maximum(m, s[d])
    e = [jnp.exp(sd - m) for sd in s]
    denom = e[0]
    for d in range(1, cout):
        denom = denom + e[d]
    inv = pl.reciprocal(denom, approx=False)  # exact: keep per-pixel sums == 1
    for d in range(cout):
        o_ref[:, d, :] = (e[d] * inv).astype(o_ref.dtype)


def ensemble_forward(x_nchw, wa, ba, wb, bb, *, tile_hw_max=128 * 1024):
    """softmax(convA_1x1(x) + convB_1x1(x), dim=1) on an NCHW input."""
    n, c, h, w = x_nchw.shape
    cout = wa.shape[1]
    hw = h * w

    # Exact fusion of the two affine heads (tiny host-side op).
    w_fused = (wa + wb).astype(jnp.float32).reshape(c * cout)
    b_fused = (ba + bb).astype(jnp.float32)

    # Keep NCHW: contiguous (free) reshape to (N, C, H*W); no transposes.
    x3 = x_nchw.astype(jnp.float32).reshape(n, c, hw)

    # Spatial tile: multiple of 128 lanes, capped so the f32 block stays ~2 MiB
    # (fits comfortably in double-buffered VMEM on v5e/v6e/v7x).
    tile_hw = min(_round_up(hw, 128), tile_hw_max)
    hw_pad = _round_up(hw, tile_hw)
    if hw_pad != hw:
        x3 = jnp.pad(x3, ((0, 0), (0, 0), (0, hw_pad - hw)))

    out3 = pl.pallas_call(
        _ensemble_kernel,
        out_shape=jax.ShapeDtypeStruct((n, cout, hw_pad), jnp.float32),
        grid=(n, hw_pad // tile_hw),
        in_specs=[
            pl.BlockSpec(memory_space=pltpu.MemorySpace.SMEM),  # fused weight
            pl.BlockSpec(memory_space=pltpu.MemorySpace.SMEM),  # fused bias
            pl.BlockSpec((1, c, tile_hw), lambda i, j: (i, 0, j)),  # x block
        ],
        out_specs=pl.BlockSpec((1, cout, tile_hw), lambda i, j: (i, 0, j)),
        compiler_params=pltpu.CompilerParams(
            dimension_semantics=("parallel", "parallel"),
            vmem_limit_bytes=32 * 1024 * 1024,
        ),
    )(w_fused, b_fused, x3)

    if hw_pad != hw:
        out3 = out3[:, :, :hw]
    return out3.reshape(n, cout, h, w)


def _reference(x_nchw, wa, ba, wb, bb):
    # Pure-JAX reference (1x1 convs as einsum) for the correctness check.
    o1 = jnp.einsum("nchw,cd->ndhw", x_nchw, wa) + ba[None, :, None, None]
    o2 = jnp.einsum("nchw,cd->ndhw", x_nchw, wb) + bb[None, :, None, None]
    return jax.nn.softmax(o1 + o2, axis=1)


if __name__ == "__main__":
    key = jax.random.PRNGKey(0)
    k_x, k_wa, k_ba, k_wb, k_bb = jax.random.split(key, 5)

    N, C, H, W = 2, 4, 16, 16            # NCHW, 4-class segmentation output
    x = jax.random.normal(k_x, (N, C, H, W), dtype=jnp.float32)

    # Deterministic synthetic parameters for the two 1x1-conv "models"
    # (weights stored as (Cin, Cout)).
    wa = jax.random.normal(k_wa, (C, C), dtype=jnp.float32) * 0.1
    ba = jax.random.normal(k_ba, (C,), dtype=jnp.float32) * 0.1
    wb = jax.random.normal(k_wb, (C, C), dtype=jnp.float32) * 0.1
    bb = jax.random.normal(k_bb, (C,), dtype=jnp.float32) * 0.1

    out = ensemble_forward(x, wa, ba, wb, bb)
    out = jax.block_until_ready(out)

    ref = _reference(x, wa, ba, wb, bb)
    assert out.shape == (N, C, H, W)
    assert jnp.allclose(out, ref, atol=1e-5, rtol=1e-5), "mismatch vs reference"
    assert jnp.allclose(jnp.sum(out, axis=1), 1.0, atol=1e-5)

    # TODO(synk): modelA / modelB are arbitrary user networks in the original
    # code; only their (affine 1x1-conv) output heads are modeled here.
    print("KERNEL_OK")
</pallas_src>

<mosaic_0001>
module attributes {stable_mosaic.version = 11 : i64} {
  func.func @_ensemble_kernel(%arg0: i32, %arg1: i32, %arg2: memref<16xf32, #tpu.memory_space<smem>>, %arg3: memref<4xf32, #tpu.memory_space<smem>>, %arg4: memref<1x4x256xf32, #tpu.memory_space<vmem>>, %arg5: memref<1x4x256xf32, #tpu.memory_space<vmem>>) attributes {dimension_semantics = [#tpu.dimension_semantics<parallel>, #tpu.dimension_semantics<parallel>], iteration_bounds = array<i64: 2, 1>, scalar_prefetch = 0 : i64, scratch_operands = 0 : i64, tpu.core_type = #tpu.core_type<tc>, window_params = [{transform_indices = @transform_0, window_bounds = array<i64: 16>}, {transform_indices = @transform_1, window_bounds = array<i64: 4>}, {transform_indices = @transform_2, window_bounds = array<i64: 1, 4, 256>}, {transform_indices = @transform_3, window_bounds = array<i64: 1, 4, 256>}]} {
    %c0 = arith.constant 0 : index
    %c0_0 = arith.constant 0 : index
    %c0_1 = arith.constant 0 : index
    %0 = vector.load %arg4[%c0, %c0_0, %c0_1] : memref<1x4x256xf32, #tpu.memory_space<vmem>>, vector<1x1x256xf32>
    %1 = vector.shape_cast %0 : vector<1x1x256xf32> to vector<1x256xf32>
    %c0_2 = arith.constant 0 : index
    %c1 = arith.constant 1 : index
    %c0_3 = arith.constant 0 : index
    %2 = vector.load %arg4[%c0_2, %c1, %c0_3] : memref<1x4x256xf32, #tpu.memory_space<vmem>>, vector<1x1x256xf32>
    %3 = vector.shape_cast %2 : vector<1x1x256xf32> to vector<1x256xf32>
    %c0_4 = arith.constant 0 : index
    %c2 = arith.constant 2 : index
    %c0_5 = arith.constant 0 : index
    %4 = vector.load %arg4[%c0_4, %c2, %c0_5] : memref<1x4x256xf32, #tpu.memory_space<vmem>>, vector<1x1x256xf32>
    %5 = vector.shape_cast %4 : vector<1x1x256xf32> to vector<1x256xf32>
    %c0_6 = arith.constant 0 : index
    %c3 = arith.constant 3 : index
    %c0_7 = arith.constant 0 : index
    %6 = vector.load %arg4[%c0_6, %c3, %c0_7] : memref<1x4x256xf32, #tpu.memory_space<vmem>>, vector<1x1x256xf32>
    %7 = vector.shape_cast %6 : vector<1x1x256xf32> to vector<1x256xf32>
    %c0_8 = arith.constant 0 : index
    %8 = memref.load %arg2[%c0_8] : memref<16xf32, #tpu.memory_space<smem>>
    %9 = vector.broadcast %8 : f32 to vector<1x256xf32>
    %10 = arith.mulf %1, %9 : vector<1x256xf32>
    %c0_9 = arith.constant 0 : index
    %11 = memref.load %arg3[%c0_9] : memref<4xf32, #tpu.memory_space<smem>>
    %12 = vector.broadcast %11 : f32 to vector<1x256xf32>
    %13 = arith.addf %10, %12 : vector<1x256xf32>
    %c4 = arith.constant 4 : index
    %14 = memref.load %arg2[%c4] : memref<16xf32, #tpu.memory_space<smem>>
    %15 = vector.broadcast %14 : f32 to vector<1x256xf32>
    %16 = arith.mulf %3, %15 : vector<1x256xf32>
    %17 = arith.addf %13, %16 : vector<1x256xf32>
    %c8 = arith.constant 8 : index
    %18 = memref.load %arg2[%c8] : memref<16xf32, #tpu.memory_space<smem>>
    %19 = vector.broadcast %18 : f32 to vector<1x256xf32>
    %20 = arith.mulf %5, %19 : vector<1x256xf32>
    %21 = arith.addf %17, %20 : vector<1x256xf32>
    %c12 = arith.constant 12 : index
    %22 = memref.load %arg2[%c12] : memref<16xf32, #tpu.memory_space<smem>>
    %23 = vector.broadcast %22 : f32 to vector<1x256xf32>
    %24 = arith.mulf %7, %23 : vector<1x256xf32>
    %25 = arith.addf %21, %24 : vector<1x256xf32>
    %c1_10 = arith.constant 1 : index
    %26 = memref.load %arg2[%c1_10] : memref<16xf32, #tpu.memory_space<smem>>
    %27 = vector.broadcast %26 : f32 to vector<1x256xf32>
    %28 = arith.mulf %1, %27 : vector<1x256xf32>
    %c1_11 = arith.constant 1 : index
    %29 = memref.load %arg3[%c1_11] : memref<4xf32, #tpu.memory_space<smem>>
    %30 = vector.broadcast %29 : f32 to vector<1x256xf32>
    %31 = arith.addf %28, %30 : vector<1x256xf32>
    %c5 = arith.constant 5 : index
    %32 = memref.load %arg2[%c5] : memref<16xf32, #tpu.memory_space<smem>>
    %33 = vector.broadcast %32 : f32 to vector<1x256xf32>
    %34 = arith.mulf %3, %33 : vector<1x256xf32>
    %35 = arith.addf %31, %34 : vector<1x256xf32>
    %c9 = arith.constant 9 : index
    %36 = memref.load %arg2[%c9] : memref<16xf32, #tpu.memory_space<smem>>
    %37 = vector.broadcast %36 : f32 to vector<1x256xf32>
    %38 = arith.mulf %5, %37 : vector<1x256xf32>
    %39 = arith.addf %35, %38 : vector<1x256xf32>
    %c13 = arith.constant 13 : index
    %40 = memref.load %arg2[%c13] : memref<16xf32, #tpu.memory_space<smem>>
    %41 = vector.broadcast %40 : f32 to vector<1x256xf32>
    %42 = arith.mulf %7, %41 : vector<1x256xf32>
    %43 = arith.addf %39, %42 : vector<1x256xf32>
    %c2_12 = arith.constant 2 : index
    %44 = memref.load %arg2[%c2_12] : memref<16xf32, #tpu.memory_space<smem>>
    %45 = vector.broadcast %44 : f32 to vector<1x256xf32>
    %46 = arith.mulf %1, %45 : vector<1x256xf32>
    %c2_13 = arith.constant 2 : index
    %47 = memref.load %arg3[%c2_13] : memref<4xf32, #tpu.memory_space<smem>>
    %48 = vector.broadcast %47 : f32 to vector<1x256xf32>
    %49 = arith.addf %46, %48 : vector<1x256xf32>
    %c6 = arith.constant 6 : index
    %50 = memref.load %arg2[%c6] : memref<16xf32, #tpu.memory_space<smem>>
    %51 = vector.broadcast %50 : f32 to vector<1x256xf32>
    %52 = arith.mulf %3, %51 : vector<1x256xf32>
    %53 = arith.addf %49, %52 : vector<1x256xf32>
    %c10 = arith.constant 10 : index
    %54 = memref.load %arg2[%c10] : memref<16xf32, #tpu.memory_space<smem>>
    %55 = vector.broadcast %54 : f32 to vector<1x256xf32>
    %56 = arith.mulf %5, %55 : vector<1x256xf32>
    %57 = arith.addf %53, %56 : vector<1x256xf32>
    %c14 = arith.constant 14 : index
    %58 = memref.load %arg2[%c14] : memref<16xf32, #tpu.memory_space<smem>>
    %59 = vector.broadcast %58 : f32 to vector<1x256xf32>
    %60 = arith.mulf %7, %59 : vector<1x256xf32>
    %61 = arith.addf %57, %60 : vector<1x256xf32>
    %c3_14 = arith.constant 3 : index
    %62 = memref.load %arg2[%c3_14] : memref<16xf32, #tpu.memory_space<smem>>
    %63 = vector.broadcast %62 : f32 to vector<1x256xf32>
    %64 = arith.mulf %1, %63 : vector<1x256xf32>
    %c3_15 = arith.constant 3 : index
    %65 = memref.load %arg3[%c3_15] : memref<4xf32, #tpu.memory_space<smem>>
    %66 = vector.broadcast %65 : f32 to vector<1x256xf32>
    %67 = arith.addf %64, %66 : vector<1x256xf32>
    %c7 = arith.constant 7 : index
    %68 = memref.load %arg2[%c7] : memref<16xf32, #tpu.memory_space<smem>>
    %69 = vector.broadcast %68 : f32 to vector<1x256xf32>
    %70 = arith.mulf %3, %69 : vector<1x256xf32>
    %71 = arith.addf %67, %70 : vector<1x256xf32>
    %c11 = arith.constant 11 : index
    %72 = memref.load %arg2[%c11] : memref<16xf32, #tpu.memory_space<smem>>
    %73 = vector.broadcast %72 : f32 to vector<1x256xf32>
    %74 = arith.mulf %5, %73 : vector<1x256xf32>
    %75 = arith.addf %71, %74 : vector<1x256xf32>
    %c15 = arith.constant 15 : index
    %76 = memref.load %arg2[%c15] : memref<16xf32, #tpu.memory_space<smem>>
    %77 = vector.broadcast %76 : f32 to vector<1x256xf32>
    %78 = arith.mulf %7, %77 : vector<1x256xf32>
    %79 = arith.addf %75, %78 : vector<1x256xf32>
    %80 = arith.maximumf %25, %43 : vector<1x256xf32>
    %81 = arith.maximumf %80, %61 : vector<1x256xf32>
    %82 = arith.maximumf %81, %79 : vector<1x256xf32>
    %83 = arith.subf %25, %82 : vector<1x256xf32>
    %84 = math.exp %83 : vector<1x256xf32>
    %85 = arith.subf %43, %82 : vector<1x256xf32>
    %86 = math.exp %85 : vector<1x256xf32>
    %87 = arith.subf %61, %82 : vector<1x256xf32>
    %88 = math.exp %87 : vector<1x256xf32>
    %89 = arith.subf %79, %82 : vector<1x256xf32>
    %90 = math.exp %89 : vector<1x256xf32>
    %91 = arith.addf %84, %86 : vector<1x256xf32>
    %92 = arith.addf %91, %88 : vector<1x256xf32>
    %93 = arith.addf %92, %90 : vector<1x256xf32>
    %94 = tpu.reciprocal %93 : vector<1x256xf32> -> vector<1x256xf32>
    %95 = arith.mulf %84, %94 : vector<1x256xf32>
    %c0_16 = arith.constant 0 : index
    %c0_17 = arith.constant 0 : index
    %c0_18 = arith.constant 0 : index
    %96 = vector.load %arg5[%c0_16, %c0_17, %c0_18] : memref<1x4x256xf32, #tpu.memory_space<vmem>>, vector<1x1x256xf32>
    %97 = vector.shape_cast %96 : vector<1x1x256xf32> to vector<1x256xf32>
    %98 = vector.shape_cast %95 : vector<1x256xf32> to vector<1x1x256xf32>
    tpu.vector_store %arg5[%c0_16, %c0_17, %c0_18], %98 {strides = array<i32>} : memref<1x4x256xf32, #tpu.memory_space<vmem>>, vector<1x1x256xf32>,
    %99 = arith.mulf %86, %94 : vector<1x256xf32>
    %c0_19 = arith.constant 0 : index
    %c1_20 = arith.constant 1 : index
    %c0_21 = arith.constant 0 : index
    %100 = vector.load %arg5[%c0_19, %c1_20, %c0_21] : memref<1x4x256xf32, #tpu.memory_space<vmem>>, vector<1x1x256xf32>
    %101 = vector.shape_cast %100 : vector<1x1x256xf32> to vector<1x256xf32>
    %102 = vector.shape_cast %99 : vector<1x256xf32> to vector<1x1x256xf32>
    tpu.vector_store %arg5[%c0_19, %c1_20, %c0_21], %102 {strides = array<i32>} : memref<1x4x256xf32, #tpu.memory_space<vmem>>, vector<1x1x256xf32>,
    %103 = arith.mulf %88, %94 : vector<1x256xf32>
    %c0_22 = arith.constant 0 : index
    %c2_23 = arith.constant 2 : index
    %c0_24 = arith.constant 0 : index
    %104 = vector.load %arg5[%c0_22, %c2_23, %c0_24] : memref<1x4x256xf32, #tpu.memory_space<vmem>>, vector<1x1x256xf32>
    %105 = vector.shape_cast %104 : vector<1x1x256xf32> to vector<1x256xf32>
    %106 = vector.shape_cast %103 : vector<1x256xf32> to vector<1x1x256xf32>
    tpu.vector_store %arg5[%c0_22, %c2_23, %c0_24], %106 {strides = array<i32>} : memref<1x4x256xf32, #tpu.memory_space<vmem>>, vector<1x1x256xf32>,
    %107 = arith.mulf %90, %94 : vector<1x256xf32>
    %c0_25 = arith.constant 0 : index
    %c3_26 = arith.constant 3 : index
    %c0_27 = arith.constant 0 : index
    %108 = vector.load %arg5[%c0_25, %c3_26, %c0_27] : memref<1x4x256xf32, #tpu.memory_space<vmem>>, vector<1x1x256xf32>
    %109 = vector.shape_cast %108 : vector<1x1x256xf32> to vector<1x256xf32>
    %110 = vector.shape_cast %107 : vector<1x256xf32> to vector<1x1x256xf32>
    tpu.vector_store %arg5[%c0_25, %c3_26, %c0_27], %110 {strides = array<i32>} : memref<1x4x256xf32, #tpu.memory_space<vmem>>, vector<1x1x256xf32>,
    return
  }
  func.func @transform_0(%arg0: i32, %arg1: i32) -> i32 {
    %c0_i32 = arith.constant 0 : i32
    %c0_i32_0 = arith.constant 0 : i32
    return %c0_i32 : i32
  }
  func.func @transform_1(%arg0: i32, %arg1: i32) -> i32 {
    %c0_i32 = arith.constant 0 : i32
    %c0_i32_0 = arith.constant 0 : i32
    return %c0_i32 : i32
  }
  func.func @transform_2(%arg0: i32, %arg1: i32) -> (i32, i32, i32) {
    %c0_i32 = arith.constant 0 : i32
    %c0_i32_0 = arith.constant 0 : i32
    return %arg0, %c0_i32, %arg1 : i32, i32, i32
  }
  func.func @transform_3(%arg0: i32, %arg1: i32) -> (i32, i32, i32) {
    %c0_i32 = arith.constant 0 : i32
    %c0_i32_0 = arith.constant 0 : i32
    return %arg0, %c0_i32, %arg1 : i32, i32, i32
  }
}

</mosaic_0001>

<llo_original>
// kernel: tpu_custom_call.1
$region0: #{tpu_custom_call.1}
  #allocation0 [shape = 'u32[]', space=smem, size = 0x4, offset = 0x4, fixed_abs, tag = 'smem constant byte address 0x4 - core index']
  #allocation1 [shape = 'u32[72,128]{1,0:T(1,128)}', space=vmem, size = 0x9000, scoped, tag = 'internal scratch']
  %s0 = inlined_call_operand.hbm [shape: f32[16], index: 0, kind: input, shape index: {}]
  %s1 = inlined_call_operand.hbm [shape: f32[4], index: 1, kind: input, shape index: {}]
  %s2 = inlined_call_operand.hbm [shape: f32[2,4,256], index: 2, kind: input, shape index: {}]
  %s3 = inlined_call_operand.hbm [shape: f32[2,4,256], index: 3, kind: output, shape index: {}]
  %s4 = sld [smem:[#allocation0]]
  $region57: #{tpu_custom_call.1} parent=0
    _
  %s6 = ssub.s32 1, %s4
  %s7 = scalar_select 0, %s6, %s4
  $region1: #{tpu_custom_call.1} parent=0
    #allocation2 [shape = 'u8[512]{0}', space=smem, size = 0x200, scoped, tag = 'input window, operand 0, single buffered']
    #allocation3 [shape = 's32[2]{0}', space=sflag, size = 0x8, scoped, tag = 'scoped memory for tpu_custom_call.1']
    #allocation4 [shape = 's32[2]{0}', space=sflag, size = 0x8, scoped, tag = 'scoped memory for tpu_custom_call.1']
    #allocation5 [shape = 's32[2]{0}', space=sflag, size = 0x8, scoped, tag = 'scoped memory for tpu_custom_call.1']
    #allocation6 [shape = 'u8[512]{0}', space=smem, size = 0x200, scoped, tag = 'input window, operand 1, single buffered']
    #allocation7 [shape = 's32[1]{0}', space=sflag, size = 0x4, scoped, tag = 'scoped memory for tpu_custom_call.1']
    #allocation8 [shape = 'u8[8192]{0}', space=vmem, size = 0x2000, scoped, tag = 'input window, operand 2']
    #allocation9 [shape = 'u8[8192]{0}', space=vmem, size = 0x2000, scoped, tag = 'output window, operand 0']
    %8 = vsyncpa [#allocation5], 0
    %9 = vsyncpa [#allocation7], 0
    %10 = vsyncpa [#allocation3], 0
    %s11 = scalar_lea.sflag [#allocation3], 1
    %12 = vsyncpa %s11, 0
    %13 = vsyncpa [#allocation4], 0
    %s14 = scalar_lea.sflag [#allocation4], 1
    %15 = vsyncpa %s14, 0
    loop: start=0, step=1, limit=4
    $region2: #{tpu_custom_call.1} parent=1 // loop_pre_header
      _
    $region3: #{tpu_custom_call.1} parent=1 // loop_header
      %s17 = sphi 0, %s21
      %p18 = scmp.ge.s32.totalorder %s17, 4
      %s24 = sphi 0, %s36
      %s25 = sphi 0, %s32
      %s26 = sphi 0, %s24
      %s27 = sphi 0, %s25
      %s28 = sphi 0, %s26
      %s29 = sphi 0, %s27
      %s37 = sphi 0, %s37
      %s39 = sphi 0, %s37
      %s40 = sphi 0, %s39
      %s54 = sphi 0, %s40
      %s58 = sphi 0, %s58
      %s60 = sphi 0, %s58
      %s61 = sphi 0, %s60
      %s75 = sphi 0, %s61
      %s83 = sphi 0, %s85
      %s86 = sphi 0, %s83
      %s87 = sphi 0, %s86
      %s103 = sphi 0, %s87
      %s111 = sphi 0, %s113
      %s114 = sphi 0, %s111
      %s115 = sphi 0, %s114
      %s131 = sphi 0, %s115
    $region4: #{tpu_custom_call.1} parent=1 // loop_header_branch
      %20 = sbr.rel (%p18) target = $region8
    $region5: #{tpu_custom_call.1} parent=1 // loop_body
      %s22 = ssub.s32 %s17, 1
      %s23 = ssub.s32 %s17, 2
      %s30 = sadd.s32 1, %s25
      %p31 = scmp.ge.s32.totalorder %s30, 1
      %s32 = scalar_select %p31, 0, %s30
      %s33 = sadd.s32 1, %s24
      %s34 = scalar_select %p31, %s33, %s24
      %p35 = scmp.ge.s32.totalorder %s34, 2
      %s36 = scalar_select %p35, 0, %s34
      %s38 = sadd.s32 %s37, 1
      %p41 = scmp.eq.s32.totalorder %s17, 1
      %p42 = scmp.ne.s32.totalorder %s37, %s39
      %p43 = scmp.eq.s32.totalorder %s17, 0
      %p44 = por %p42, %p43
      %p45 = scmp.ne.s32.totalorder %s37, %s39
      %p46 = scmp.eq.s32.totalorder %s22, 1
      %p47 = por %p45, %p46
      %p48 = scmp.ne.s32.totalorder %s39, %s40
      %p49 = scmp.eq.s32.totalorder %s22, 0
      %p50 = por %p48, %p49
      %p51 = scmp.ne.s32.totalorder %s39, %s40
      %p52 = scmp.eq.s32.totalorder %s23, 1
      %p53 = por %p51, %p52
      %p55 = scmp.ne.s32.totalorder %s40, %s54
      %p56 = scmp.eq.s32.totalorder %s23, 0
      %p57 = por %p55, %p56
      %s59 = sadd.s32 %s58, 1
      %p62 = scmp.eq.s32.totalorder %s17, 1
      %p63 = scmp.ne.s32.totalorder %s58, %s60
      %p64 = scmp.eq.s32.totalorder %s17, 0
      %p65 = por %p63, %p64
      %p66 = scmp.ne.s32.totalorder %s58, %s60
      %p67 = scmp.eq.s32.totalorder %s22, 1
      %p68 = por %p66, %p67
      %p69 = scmp.ne.s32.totalorder %s60, %s61
      %p70 = scmp.eq.s32.totalorder %s22, 0
      %p71 = por %p69, %p70
      %p72 = scmp.ne.s32.totalorder %s60, %s61
      %p73 = scmp.eq.s32.totalorder %s23, 1
      %p74 = por %p72, %p73
      %p76 = scmp.ne.s32.totalorder %s61, %s75
      %p77 = scmp.eq.s32.totalorder %s23, 0
      %p78 = por %p76, %p77
      %s79 = ssub.s32 %s24, %s36
      %s80 = ssub.s32 %s25, %s32
      %s81 = sor.u32 %s79, %s80
      %p82 = scmp.eq.s32.totalorder %s81, 0
      %s84 = sadd.s32 %s83, 1
      %s85 = scalar_select %p82, %s83, %s84
      %p88 = pneg %p82
      %p89 = scmp.eq.s32.totalorder %s17, 1
      %p90 = por %p88, %p89
      %p91 = scmp.ne.s32.totalorder %s83, %s86
      %p92 = scmp.eq.s32.totalorder %s17, 0
      %p93 = por %p91, %p92
      %p94 = scmp.ne.s32.totalorder %s83, %s86
      %p95 = scmp.eq.s32.totalorder %s22, 1
      %p96 = por %p94, %p95
      %p97 = scmp.ne.s32.totalorder %s86, %s87
      %p98 = scmp.eq.s32.totalorder %s22, 0
      %p99 = por %p97, %p98
      %p100 = scmp.ne.s32.totalorder %s86, %s87
      %p101 = scmp.eq.s32.totalorder %s23, 1
      %p102 = por %p100, %p101
      %p104 = scmp.ne.s32.totalorder %s87, %s103
      %p105 = scmp.eq.s32.totalorder %s23, 0
      %p106 = por %p104, %p105
      %s107 = ssub.s32 %s24, %s36
      %s108 = ssub.s32 %s25, %s32
      %s109 = sor.u32 %s107, %s108
      %p110 = scmp.eq.s32.totalorder %s109, 0
      %s112 = sadd.s32 %s111, 1
      %s113 = scalar_select %p110, %s111, %s112
      %p116 = pneg %p110
      %p117 = scmp.eq.s32.totalorder %s17, 1
      %p118 = por %p116, %p117
      %p119 = scmp.ne.s32.totalorder %s111, %s114
      %p120 = scmp.eq.s32.totalorder %s17, 0
      %p121 = por %p119, %p120
      %p122 = scmp.ne.s32.totalorder %s111, %s114
      %p123 = scmp.eq.s32.totalorder %s22, 1
      %p124 = por %p122, %p123
      %p125 = scmp.ne.s32.totalorder %s114, %s115
      %p126 = scmp.eq.s32.totalorder %s22, 0
      %p127 = por %p125, %p126
      %p128 = scmp.ne.s32.totalorder %s114, %s115
      %p129 = scmp.eq.s32.totalorder %s23, 1
      %p130 = por %p128, %p129
      %p132 = scmp.ne.s32.totalorder %s115, %s131
      %p133 = scmp.eq.s32.totalorder %s23, 0
      %p134 = por %p132, %p133
      %p135 = scmp.le.s32.totalorder 1, %s17
      %p136 = scmp.lt.s32.totalorder %s17, 3
      %p137 = pnand %p135, %p136
      %p138 = pneg %p137
      // Predicated region
      $region9: #{tpu_custom_call.1} parent=5 // pred_check
        _
      $region10: #{tpu_custom_call.1} parent=5 // pred_check_branch
        %140 = sbr.rel (%p137) target = $region12
      $region11: #{tpu_custom_call.1} parent=5 // pred_region
        %s141 = ssub.s32 %s17, 1
        // Predicated region
        $region13: #{tpu_custom_call.1} parent=11 // pred_check
          %p142 = pneg %p50
        $region14: #{tpu_custom_call.1} parent=11 // pred_check_branch
          %144 = sbr.rel (%p142) target = $region16
        $region15: #{tpu_custom_call.1} parent=11 // pred_region
          %146 = vsyncadd [#allocation5], 0
          %s148 = sshll.u32 %s0, 4
          %s149 = int_to_ptr.hbm [resolvable:$true] %s148
          %151 = dma.hbm_to_smem %s149, 16, [#allocation2], [#allocation5]
        $region16: #{tpu_custom_call.1} parent=11 // pred_fallthru
          _
        // Predicated region
        $region17: #{tpu_custom_call.1} parent=11 // pred_check
          %p152 = pneg %p71
        $region18: #{tpu_custom_call.1} parent=11 // pred_check_branch
          %154 = sbr.rel (%p152) target = $region20
        $region19: #{tpu_custom_call.1} parent=11 // pred_region
          %156 = vsyncadd [#allocation7], 0
          %s158 = sshll.u32 %s1, 4
          %s159 = int_to_ptr.hbm [resolvable:$true] %s158
          %161 = dma.hbm_to_smem %s159, 16, [#allocation6], [#allocation7]
        $region20: #{tpu_custom_call.1} parent=11 // pred_fallthru
          _
      $region12: #{tpu_custom_call.1} parent=5 // pred_fallthru
        _
      %p162 = scmp.lt.s32.totalorder %s17, 2
      // Predicated region
      $region21: #{tpu_custom_call.1} parent=5 // pred_check
        %p163 = pneg %p162
      $region22: #{tpu_custom_call.1} parent=5 // pred_check_branch
        %165 = sbr.rel (%p163) target = $region24
      $region23: #{tpu_custom_call.1} parent=5 // pred_region
        // Predicated region
        $region25: #{tpu_custom_call.1} parent=23 // pred_check
          %p166 = pneg %p93
        $region26: #{tpu_custom_call.1} parent=23 // pred_check_branch
          %168 = sbr.rel (%p166) target = $region28
        $region27: #{tpu_custom_call.1} parent=23 // pred_region
          %s169 = sand.u32 %s83, 1
          %s170 = scalar_lea.sflag [#allocation3], %s169
          %s171 = sand.u32 %s83, 1
          %s172 = smul.addr %s171, 8
          %s173 = scalar_lea.vmem [#allocation8], %s172
          %s174 = smul.u32 2, %s25
          %176 = vsyncadd %s170, 0
          %s177 = smul.addr %s24, 2
          %s178 = sadd.s32 %s174, %s177
          %s179 = smul.addr %s178, 4
          %s180 = scalar_lea.hbm %s2, %s179
          %s182 = sshll.u32 %s180, 4
          %s183 = int_to_ptr.hbm [resolvable:$true] %s182
          %s184 = sshll.u32 %s173, 4
          %s185 = int_to_ptr.vmem [resolvable:$true] %s184
          %187 = dma.hbm_to_vmem [thread:$0]  %s183, 128, %s185, %s170
        $region28: #{tpu_custom_call.1} parent=23 // pred_fallthru
          _
      $region24: #{tpu_custom_call.1} parent=5 // pred_fallthru
        _
      %p188 = scmp.le.s32.totalorder 1, %s17
      %p189 = scmp.lt.s32.totalorder %s17, 3
      %p190 = pnand %p188, %p189
      %p191 = pneg %p190
      // Predicated region
      $region29: #{tpu_custom_call.1} parent=5 // pred_check
        _
      $region30: #{tpu_custom_call.1} parent=5 // pred_check_branch
        %193 = sbr.rel (%p190) target = $region32
      $region31: #{tpu_custom_call.1} parent=5 // pred_region
        %s194 = ssub.s32 %s17, 1
        // Predicated region
        $region33: #{tpu_custom_call.1} parent=31 // pred_check
          %p195 = pneg %p50
        $region34: #{tpu_custom_call.1} parent=31 // pred_check_branch
          %197 = sbr.rel (%p195) target = $region36
        $region35: #{tpu_custom_call.1} parent=31 // pred_region
          %199 = dma.done [#allocation5], 16
        $region36: #{tpu_custom_call.1} parent=31 // pred_fallthru
          _
        // Predicated region
        $region37: #{tpu_custom_call.1} parent=31 // pred_check
          %p200 = pneg %p71
        $region38: #{tpu_custom_call.1} parent=31 // pred_check_branch
          %202 = sbr.rel (%p200) target = $region40
        $region39: #{tpu_custom_call.1} parent=31 // pred_region
          %204 = dma.done [#allocation7], 16
        $region40: #{tpu_custom_call.1} parent=31 // pred_fallthru
          _
        %s205 = sand.u32 %s86, 1
        %s206 = scalar_lea.sflag [#allocation3], %s205
        %s207 = sand.u32 %s86, 1
        %s208 = smul.addr %s207, 8
        %s209 = scalar_lea.vmem [#allocation8], %s208
        // Predicated region
        $region41: #{tpu_custom_call.1} parent=31 // pred_check
          %p210 = pneg %p99
        $region42: #{tpu_custom_call.1} parent=31 // pred_check_branch
          %212 = sbr.rel (%p210) target = $region44
        $region43: #{tpu_custom_call.1} parent=31 // pred_region
          %214 = dma.done %s206, 128
        $region44: #{tpu_custom_call.1} parent=31 // pred_fallthru
          _
        %215 = sfence
        %p216 = pneg %p50
        %p217 = pneg %p47
        %p218 = pneg %p71
        %p219 = pneg %p68
        %s220 = sand.u32 %s86, 1
        %s221 = scalar_lea.sflag [#allocation3], %s220
        %s222 = sand.u32 %s86, 1
        %s223 = smul.addr %s222, 8
        %s224 = scalar_lea.vmem [#allocation8], %s223
        %p225 = pneg %p99
        %p226 = pneg %p96
        %p227 = pneg %p127
        %p228 = pneg %p124
        %s229 = sand.u32 %s114, 1
        %s230 = scalar_lea.sflag [#allocation4], %s229
        %s231 = sand.u32 %s114, 1
        %s232 = smul.addr %s231, 8
        %s233 = scalar_lea.vmem [#allocation9], %s232
        %s234 = smul.u32 2, %s27
        %s235 = smul.u32 2, %s27
        %v236 = vld [vmem:[%s209] ss:$4 sm:$0x3]
        %s237 = scalar_lea.vmem %s209, 1 [#allocation8]
        %v238 = vld [vmem:[%s237] ss:$4 sm:$0x3]
        %s239 = scalar_lea.vmem %s209, 2 [#allocation8]
        %v240 = vld [vmem:[%s239] ss:$4 sm:$0x3]
        %s241 = scalar_lea.vmem %s209, 3 [#allocation8]
        %v242 = vld [vmem:[%s241] ss:$4 sm:$0x3]
        %s243 = sld [smem:[#allocation2]]
        %v244 = vstv %s243
        %v245 = vmul.f32 %v236, %v244
        %s246 = sld [smem:[#allocation6]]
        %v247 = vstv %s246
        %v248 = vadd.f32 %v245, %v247
        %s249 = sld [smem:[#allocation2 + $0x4]]
        %v250 = vstv %s249
        %v251 = vmul.f32 %v238, %v250
        %v252 = vadd.f32 %v248, %v251
        %s253 = sld [smem:[#allocation2 + $0x8]]
        %v254 = vstv %s253
        %v255 = vmul.f32 %v240, %v254
        %v256 = vadd.f32 %v252, %v255
        %s257 = sld [smem:[#allocation2 + $0xc]]
        %v258 = vstv %s257
        %v259 = vmul.f32 %v242, %v258
        %v260 = vadd.f32 %v256, %v259
        %s261 = sld [smem:[#allocation2 + $0x1]]
        %v262 = vstv %s261
        %v263 = vmul.f32 %v236, %v262
        %s264 = sld [smem:[#allocation6 + $0x1]]
        %v265 = vstv %s264
        %v266 = vadd.f32 %v263, %v265
        %s267 = sld [smem:[#allocation2 + $0x5]]
        %v268 = vstv %s267
        %v269 = vmul.f32 %v238, %v268
        %v270 = vadd.f32 %v266, %v269
        %s271 = sld [smem:[#allocation2 + $0x9]]
        %v272 = vstv %s271
        %v273 = vmul.f32 %v240, %v272
        %v274 = vadd.f32 %v270, %v273
        %s275 = sld [smem:[#allocation2 + $0xd]]
        %v276 = vstv %s275
        %v277 = vmul.f32 %v242, %v276
        %v278 = vadd.f32 %v274, %v277
        %s279 = sld [smem:[#allocation2 + $0x2]]
        %v280 = vstv %s279
        %v281 = vmul.f32 %v236, %v280
        %s282 = sld [smem:[#allocation6 + $0x2]]
        %v283 = vstv %s282
        %v284 = vadd.f32 %v281, %v283
        %s285 = sld [smem:[#allocation2 + $0x6]]
        %v286 = vstv %s285
        %v287 = vmul.f32 %v238, %v286
        %v288 = vadd.f32 %v284, %v287
        %s289 = sld [smem:[#allocation2 + $0xa]]
        %v290 = vstv %s289
        %v291 = vmul.f32 %v240, %v290
        %v292 = vadd.f32 %v288, %v291
        %s293 = sld [smem:[#allocation2 + $0xe]]
        %v294 = vstv %s293
        %v295 = vmul.f32 %v242, %v294
        %v296 = vadd.f32 %v292, %v295
        %s297 = sld [smem:[#allocation2 + $0x3]]
        %v298 = vstv %s297
        %v299 = vmul.f32 %v236, %v298
        %s300 = sld [smem:[#allocation6 + $0x3]]
        %v301 = vstv %s300
        %v302 = vadd.f32 %v299, %v301
        %s303 = sld [smem:[#allocation2 + $0x7]]
        %v304 = vstv %s303
        %v305 = vmul.f32 %v238, %v304
        %v306 = vadd.f32 %v302, %v305
        %s307 = sld [smem:[#allocation2 + $0xb]]
        %v308 = vstv %s307
        %v309 = vmul.f32 %v240, %v308
        %v310 = vadd.f32 %v306, %v309
        %s311 = sld [smem:[#allocation2 + $0xf]]
        %v312 = vstv %s311
        %v313 = vmul.f32 %v242, %v312
        %v314 = vadd.f32 %v310, %v313
        %v315 = vmax.f32 %v260, %v278
        %v316 = vmax.f32 %v315, %v296
        %v317 = vmax.f32 %v316, %v314
        %v318 = vsub.f32 %v260, %v317
        %v319 = vmul.f32 %v318, 1.442695
        %v320 = vpow.pop %v319
        %v321 = vsub.f32 %v278, %v317
        %v322 = vmul.f32 %v321, 1.442695
        %v323 = vpow.pop %v322
        %v324 = vsub.f32 %v296, %v317
        %v325 = vmul.f32 %v324, 1.442695
        %v326 = vpow.pop %v325
        %v327 = vsub.f32 %v314, %v317
        %v328 = vmul.f32 %v327, 1.442695
        %v329 = vpow.pop %v328
        %v330 = vadd.f32 %v320, %v323
        %v331 = vadd.f32 %v330, %v326
        %v332 = vadd.f32 %v331, %v329
        %v333 = vrcp.pop %v332
        %v334 = vmul.f32 %v332, %v333
        %v335 = vsub.f32 1.0, %v334
        %v336 = vmul.f32 %v333, %v335
        %v337 = vadd.f32 %v333, %v336
        %vm338 = vweird.f32 %v332
        %vm339 = vweird.f32 %v333
        %vm340 = vmor %vm338, %vm339
        %v341 = vsel %vm340, %v333, %v337
        %v342 = vand.u32 2147483647, %v332
        %vm343 = vcmp.eq.f32.partialorder %v342, 8.507059e+37
        %v344 = vand.u32 %v332, 2147483648
        %v345 = vor.u32 1.1754944e-38, %v344
        %v346 = vsel %vm343, %v345, %v341
        %v347 = vmul.f32 %v320, %v346
        %v348 = vlaneseq
        %vm349 = vcmp.ge.s32.totalorder %v348, 0
        %vm350 = vcmp.lt.s32.totalorder %v348, 256
        %vm351 = vmand %vm349, %vm350
        %352 = vst.msk [vmem:[%s233] ss:$4 sm:$0x3] %vm351, %v347
        %v353 = vmul.f32 %v323, %v346
        %s354 = scalar_lea.vmem %s233, 1 [#allocation9]
        %355 = vst.msk [vmem:[%s354] ss:$4 sm:$0x3] %vm351, %v353
        %v356 = vmul.f32 %v326, %v346
        %s357 = scalar_lea.vmem %s233, 2 [#allocation9]
        %358 = vst.msk [vmem:[%s357] ss:$4 sm:$0x3] %vm351, %v356
        %v359 = vmul.f32 %v329, %v346
        %s360 = scalar_lea.vmem %s233, 3 [#allocation9]
        %361 = vst.msk [vmem:[%s360] ss:$4 sm:$0x3] %vm351, %v359
        %s362 = sand.u32 %s114, 1
        %s363 = scalar_lea.sflag [#allocation4], %s362
        %s364 = sand.u32 %s114, 1
        %s365 = smul.addr %s364, 8
        %s366 = scalar_lea.vmem [#allocation9], %s365
        // Predicated region
        $region45: #{tpu_custom_call.1} parent=31 // pred_check
          %p367 = pneg %p124
        $region46: #{tpu_custom_call.1} parent=31 // pred_check_branch
          %369 = sbr.rel (%p367) target = $region48
        $region47: #{tpu_custom_call.1} parent=31 // pred_region
          %s370 = smul.u32 2, %s27
          %372 = vsyncadd %s363, 0
          %s373 = smul.addr %s26, 2
          %s374 = sadd.s32 %s370, %s373
          %s375 = smul.addr %s374, 4
          %s376 = scalar_lea.hbm %s3, %s375
          %s378 = sshll.u32 %s366, 4
          %s379 = int_to_ptr.vmem [resolvable:$true] %s378
          %s380 = sshll.u32 %s376, 4
          %s381 = int_to_ptr.hbm [resolvable:$true] %s380
          %383 = dma.vmem_to_hbm [thread:$0]  %s379, 128, %s381, %s363
        $region48: #{tpu_custom_call.1} parent=31 // pred_fallthru
          _
      $region32: #{tpu_custom_call.1} parent=5 // pred_fallthru
        _
      %p384 = scmp.le.s32.totalorder 2, %s17
      // Predicated region
      $region49: #{tpu_custom_call.1} parent=5 // pred_check
        %p385 = pneg %p384
      $region50: #{tpu_custom_call.1} parent=5 // pred_check_branch
        %387 = sbr.rel (%p385) target = $region52
      $region51: #{tpu_custom_call.1} parent=5 // pred_region
        %s388 = ssub.s32 %s17, 2
        // Predicated region
        $region53: #{tpu_custom_call.1} parent=51 // pred_check
          %p389 = pneg %p130
        $region54: #{tpu_custom_call.1} parent=51 // pred_check_branch
          %391 = sbr.rel (%p389) target = $region56
        $region55: #{tpu_custom_call.1} parent=51 // pred_region
          %s392 = sand.u32 %s115, 1
          %s393 = scalar_lea.sflag [#allocation4], %s392
          %s394 = sand.u32 %s115, 1
          %s395 = smul.addr %s394, 8
          %s396 = scalar_lea.vmem [#allocation9], %s395
          %398 = dma.done %s393, 128
        $region56: #{tpu_custom_call.1} parent=51 // pred_fallthru
          _
      $region52: #{tpu_custom_call.1} parent=5 // pred_fallthru
        _
    $region6: #{tpu_custom_call.1} parent=1 // loop_footer
      %s21 = sadd.s32 1, %s17
    $region7: #{tpu_custom_call.1} parent=1 // loop_footer_branch
      %16 = sbr.rel target = $region3
    $region8: #{tpu_custom_call.1} parent=1 // loop_exit
      _
    %399 = vsyncpa [#allocation3], 1
    %s400 = scalar_lea.sflag [#allocation3], 1
    %401 = vsyncpa %s400, 1
    %402 = vsyncpa [#allocation4], 1
    %s403 = scalar_lea.sflag [#allocation4], 1
    %404 = vsyncpa %s403, 1
    %405 = vsyncpa [#allocation5], 1
    %s406 = scalar_lea.sflag [#allocation5], 1
    %407 = vsyncpa %s406, 1
    %408 = vsyncpa [#allocation7], 1

</llo_original>
